<compile_context>
chip_gen: v7x
topology: tpu7x:2x2x1
jax: 0.10.0
libtpu: 0.0.40
codegen_flags: <defaults>
</compile_context>

<pallas_src>
import jax
import jax.numpy as jnp
from jax.experimental import pallas as pl
from jax.experimental.pallas import tpu as pltpu


# ------------------------------ helpers -------------------------------------

def _round_up(x, m):
    return ((x + m - 1) // m) * m


def _pick_tile(total, unit, max_tile):
    """`total` is a multiple of `unit`: return the largest tile that is a
    multiple of `unit`, divides `total` evenly, and is <= max_tile (>= unit)."""
    q = total // unit
    max_q = max(1, min(q, max_tile // unit))
    for d in range(max_q, 0, -1):
        if q % d == 0:
            return d * unit
    return unit


def _pick_tn(out_features):
    """Largest tn in {512, 256, 128} that adds no padding beyond the 128 min."""
    n_min = _round_up(out_features, 128)
    for cand in (512, 256, 128):
        if _round_up(out_features, cand) == n_min:
            return cand
    return 128


def _vmem_limit_bytes():
    # v7x: 64 MiB VMEM / TensorCore; v5e/v6e: 128 MiB.  Leave headroom.
    try:
        cap = int(pltpu.get_tpu_info().vmem_capacity_bytes)
    except Exception:
        cap = 64 * 1024 * 1024            # conservative (v7x-safe) fallback
    return max(32 * 1024 * 1024, min(cap * 3 // 4, 96 * 1024 * 1024))


def _weight_spec_ktiled(tk, w_tile_n):
    """Weight BlockSpec for the K-tiled path.  Ask for a 3-deep pipeline so the
    weight DMA stays hidden in the weight-stream-bound regime (esp. v5e)."""
    idx = lambda i, j, k: (k, j)
    try:
        return pl.BlockSpec((tk, w_tile_n), idx, pipeline_mode=pl.Buffered(3))
    except (TypeError, AttributeError):
        # Older API without pipeline_mode: fall back to default double-buffer.
        return pl.BlockSpec((tk, w_tile_n), idx)


# ----------------------------- Pallas kernels --------------------------------

def _fc_mfm_kernel(x_ref, w_ref, b_ref, o_ref, acc_ref):
    """K-tiled MFM linear.

    x_ref:   (tm, tk)      compute dtype (bf16 by default)
    w_ref:   (tk, 2*tn)    fused [w1_tile || w2_tile] per N-tile
    b_ref:   (1,  2*tn)    float32
    o_ref:   (tm, tn)
    acc_ref: (tm, 2*tn)    float32 scratch
    """
    k = pl.program_id(2)
    prod = jnp.dot(x_ref[...], w_ref[...], preferred_element_type=jnp.float32)

    @pl.when(k == 0)
    def _():
        acc_ref[...] = prod            # assign: no zero-init + RMW round trip

    @pl.when(k > 0)
    def _():
        acc_ref[...] += prod

    @pl.when(k == pl.num_programs(2) - 1)
    def _():
        tn = o_ref.shape[-1]
        y = acc_ref[...] + b_ref[...]
        o_ref[...] = jnp.maximum(y[:, :tn], y[:, tn:]).astype(o_ref.dtype)


def _fc_mfm_single_k_kernel(x_ref, w_ref, b_ref, o_ref):
    """Whole-K fast path (num_k == 1): no f32 accumulator round trip."""
    tn = o_ref.shape[-1]
    y = jnp.dot(x_ref[...], w_ref[...],
                preferred_element_type=jnp.float32) + b_ref[...]
    o_ref[...] = jnp.maximum(y[:, :tn], y[:, tn:]).astype(o_ref.dtype)


def _fc_kernel(x_ref, w_ref, b_ref, o_ref, acc_ref):
    """K-tiled plain linear (MFM=False path)."""
    k = pl.program_id(2)
    prod = jnp.dot(x_ref[...], w_ref[...], preferred_element_type=jnp.float32)

    @pl.when(k == 0)
    def _():
        acc_ref[...] = prod

    @pl.when(k > 0)
    def _():
        acc_ref[...] += prod

    @pl.when(k == pl.num_programs(2) - 1)
    def _():
        o_ref[...] = (acc_ref[...] + b_ref[...]).astype(o_ref.dtype)


def _fc_single_k_kernel(x_ref, w_ref, b_ref, o_ref):
    """Whole-K fast path for the plain linear."""
    y = jnp.dot(x_ref[...], w_ref[...],
                preferred_element_type=jnp.float32) + b_ref[...]
    o_ref[...] = y.astype(o_ref.dtype)


# ------------------------ one-time parameter prep ----------------------------

def prepare_fc_mfm_params(weight, bias, out_features, mfm=True,
                          compute_dtype=jnp.bfloat16, max_tk=2048):
    """Transpose / pad / tile-interleave / cast the PyTorch Linear params once.

    Args:
      weight: (2*out_features, in_features) if mfm else (out_features, in_features)
      bias:   (2*out_features,)             if mfm else (out_features,)
      compute_dtype: MXU input dtype for x and w (bf16 by default; f32 accum).
      max_tk: cap on the K tile (mainly for testing the K-tiled path).
    """
    in_features = weight.shape[1]

    # K: pad to the 128-lane minimum first, then pick tk as a divisor of K_pad.
    K_pad = _round_up(in_features, 128)
    tk = _pick_tile(K_pad, 128, max_tk)

    # N: largest tn that adds no padding beyond the 128 minimum.
    tn = _pick_tn(out_features)
    N_pad = _round_up(out_features, tn)

    wt = jnp.transpose(weight)                      # (in, 2*out) or (in, out)
    pad_k, pad_n = K_pad - in_features, N_pad - out_features

    if mfm:
        w1 = jnp.pad(wt[:, :out_features], ((0, pad_k), (0, pad_n)))
        w2 = jnp.pad(wt[:, out_features:], ((0, pad_k), (0, pad_n)))
        n_tiles = N_pad // tn
        # Interleave per N-tile: fused tile j = [w1 tile j || w2 tile j], so one
        # (tm,tk)x(tk,2*tn) dot feeds both MFM halves of an output tile.
        w = jnp.concatenate(
            [w1.reshape(K_pad, n_tiles, tn), w2.reshape(K_pad, n_tiles, tn)],
            axis=2).reshape(K_pad, 2 * N_pad)
        b1 = jnp.pad(bias[:out_features], (0, pad_n))
        b2 = jnp.pad(bias[out_features:], (0, pad_n))
        b = jnp.concatenate(
            [b1.reshape(n_tiles, tn), b2.reshape(n_tiles, tn)],
            axis=1).reshape(1, 2 * N_pad)
    else:
        w = jnp.pad(wt, ((0, pad_k), (0, pad_n)))           # (K_pad, N_pad)
        b = jnp.pad(bias, (0, pad_n)).reshape(1, N_pad)     # (1, N_pad)

    # MXU-native dtype for the streamed operands; bias stays f32 (epilogue add).
    w = w.astype(compute_dtype)
    b = b.astype(jnp.float32)

    return {
        "w": w, "b": b, "mfm": mfm, "compute_dtype": compute_dtype,
        "in_features": in_features, "out_features": out_features,
        "K_pad": K_pad, "N_pad": N_pad, "tk": tk, "tn": tn,
    }


# ------------------------------ forward pass ---------------------------------

def fully_connected_mfm(x, params):
    """Forward pass using prepared params.  x: (B, in_features) -> (B, out_features)."""
    M, in_f = x.shape
    assert in_f == params["in_features"]
    mfm = params["mfm"]
    cd = params["compute_dtype"]
    K_pad, tk = params["K_pad"], params["tk"]
    N_pad, tn = params["N_pad"], params["tn"]
    out_features = params["out_features"]
    w, b = params["w"], params["b"]
    out_dtype = x.dtype

    # M: pad only to the 8-row sublane minimum, tm = divisor of M_pad (<= 512).
    M_pad = _round_up(M, 8)
    tm = _pick_tile(M_pad, 8, 512)
    # v7x has 2 TensorCores sharded over the "parallel" grid axes: make sure the
    # (i, j) grid exposes >= 2 blocks whenever the problem allows it.
    if (M_pad // tm) * (N_pad // tn) == 1 and M_pad >= 16:
        tm = _pick_tile(M_pad, 8, M_pad // 2)

    x_p = x.astype(cd)
    if (M_pad, K_pad) != (M, in_f):
        x_p = jnp.pad(x_p, ((0, M_pad - M), (0, K_pad - in_f)))

    num_k = K_pad // tk
    w_tile_n = 2 * tn if mfm else tn
    vmem_limit = _vmem_limit_bytes()

    if num_k == 1:
        # Fast path: whole K in one dot, no accumulator scratch at all.
        kernel = _fc_mfm_single_k_kernel if mfm else _fc_single_k_kernel
        out_p = pl.pallas_call(
            kernel,
            out_shape=jax.ShapeDtypeStruct((M_pad, N_pad), out_dtype),
            grid_spec=pltpu.PrefetchScalarGridSpec(
                num_scalar_prefetch=0,
                grid=(M_pad // tm, N_pad // tn),
                in_specs=[
                    pl.BlockSpec((tm, K_pad), lambda i, j: (i, 0)),
                    pl.BlockSpec((K_pad, w_tile_n), lambda i, j: (0, j)),
                    pl.BlockSpec((1, w_tile_n), lambda i, j: (0, j)),
                ],
                out_specs=pl.BlockSpec((tm, tn), lambda i, j: (i, j)),
            ),
            compiler_params=pltpu.CompilerParams(
                dimension_semantics=("parallel", "parallel"),
                vmem_limit_bytes=vmem_limit,
            ),
        )(x_p, w, b)
    else:
        kernel = _fc_mfm_kernel if mfm else _fc_kernel
        out_p = pl.pallas_call(
            kernel,
            out_shape=jax.ShapeDtypeStruct((M_pad, N_pad), out_dtype),
            grid_spec=pltpu.PrefetchScalarGridSpec(
                num_scalar_prefetch=0,
                grid=(M_pad // tm, N_pad // tn, num_k),
                in_specs=[
                    pl.BlockSpec((tm, tk), lambda i, j, k: (i, k)),
                    _weight_spec_ktiled(tk, w_tile_n),
                    pl.BlockSpec((1, w_tile_n), lambda i, j, k: (0, j)),
                ],
                out_specs=pl.BlockSpec((tm, tn), lambda i, j, k: (i, j)),
                scratch_shapes=[pltpu.VMEM((tm, w_tile_n), jnp.float32)],
            ),
            compiler_params=pltpu.CompilerParams(
                dimension_semantics=("parallel", "parallel", "arbitrary"),
                vmem_limit_bytes=vmem_limit,
            ),
        )(x_p, w, b)

    return out_p[:M, :out_features]


# --------------------------------- main --------------------------------------

def _reference(x, weight, bias, out_features, mfm, compute_dtype):
    """Pure-JAX reference in the same compute dtype (f32 accumulation)."""
    full = jnp.dot(x.astype(compute_dtype), jnp.transpose(weight).astype(compute_dtype),
                   preferred_element_type=jnp.float32) + bias.astype(jnp.float32)
    if mfm:
        full = jnp.maximum(full[:, :out_features], full[:, out_features:])
    return full.astype(x.dtype)


def _check(name, out, ref, atol, rtol):
    assert out.shape == ref.shape, (name, out.shape, ref.shape)
    o = out.astype(jnp.float32)
    r = ref.astype(jnp.float32)
    assert bool(jnp.allclose(o, r, atol=atol, rtol=rtol)), (
        f"{name}: max abs err {float(jnp.max(jnp.abs(o - r)))}")


if __name__ == "__main__":
    key = jax.random.PRNGKey(0)

    def make(b, in_f, out_f, mfm, k):
        kx, kw, kb = jax.random.split(k, 3)
        n_out = 2 * out_f if mfm else out_f
        bound = 1.0 / (in_f ** 0.5)
        x = jax.random.normal(kx, (b, in_f), dtype=jnp.float32)
        weight = jax.random.uniform(kw, (n_out, in_f), minval=-bound,
                                    maxval=bound, dtype=jnp.float32)
        bias = jax.random.uniform(kb, (n_out,), minval=-bound,
                                  maxval=bound, dtype=jnp.float32)
        return x, weight, bias

    k0, k1, k2, k3 = jax.random.split(key, 4)

    # A) MFM, bf16 compute (default), whole-K fast path (num_k == 1).
    x, w_t, b_t = make(2, 32, 16, True, k0)
    p = prepare_fc_mfm_params(w_t, b_t, 16, mfm=True)
    out = jax.block_until_ready(fully_connected_mfm(x, p))
    _check("mfm_bf16_fastpath", out,
           _reference(x, w_t, b_t, 16, True, jnp.bfloat16), atol=1e-4, rtol=1e-4)
    _check("mfm_bf16_vs_f32_truth", out,
           _reference(x, w_t, b_t, 16, True, jnp.float32), atol=5e-2, rtol=5e-2)

    # B) MFM, f32 compute, K-tiled accumulator path (num_k = 3), ragged batch
    #    to exercise M padding + the >=2-parallel-block tm split.
    x, w_t, b_t = make(10, 384, 16, True, k1)
    p = prepare_fc_mfm_params(w_t, b_t, 16, mfm=True,
                              compute_dtype=jnp.float32, max_tk=128)
    out = jax.block_until_ready(fully_connected_mfm(x, p))
    _check("mfm_f32_ktiled", out,
           _reference(x, w_t, b_t, 16, True, jnp.float32), atol=1e-4, rtol=1e-4)

    # C) plain linear (MFM=False), f32 compute, whole-K fast path.
    x, w_t, b_t = make(2, 32, 16, False, k2)
    p = prepare_fc_mfm_params(w_t, b_t, 16, mfm=False, compute_dtype=jnp.float32)
    out = jax.block_until_ready(fully_connected_mfm(x, p))
    _check("fc_f32_fastpath", out,
           _reference(x, w_t, b_t, 16, False, jnp.float32), atol=1e-4, rtol=1e-4)

    # D) plain linear (MFM=False), bf16 compute, K-tiled path (num_k = 2).
    x, w_t, b_t = make(2, 256, 16, False, k3)
    p = prepare_fc_mfm_params(w_t, b_t, 16, mfm=False, max_tk=128)
    out = jax.block_until_ready(fully_connected_mfm(x, p))
    _check("fc_bf16_ktiled", out,
           _reference(x, w_t, b_t, 16, False, jnp.bfloat16), atol=1e-4, rtol=1e-4)

    print("KERNEL_OK")
</pallas_src>

<mosaic_0001>
module attributes {stable_mosaic.version = 11 : i64} {
  func.func @_fc_mfm_single_k_kernel(%arg0: i32, %arg1: i32, %arg2: memref<8x128xbf16, #tpu.memory_space<vmem>>, %arg3: memref<128x256xbf16, #tpu.memory_space<vmem>>, %arg4: memref<1x256xf32, #tpu.memory_space<vmem>>, %arg5: memref<8x128xf32, #tpu.memory_space<vmem>>) attributes {dimension_semantics = [#tpu.dimension_semantics<parallel>, #tpu.dimension_semantics<parallel>], iteration_bounds = array<i64: 1, 1>, scalar_prefetch = 0 : i64, scratch_operands = 0 : i64, tpu.core_type = #tpu.core_type<tc>, window_params = [{transform_indices = @transform_0, window_bounds = array<i64: 8, 128>}, {transform_indices = @transform_1, window_bounds = array<i64: 128, 256>}, {transform_indices = @transform_2, window_bounds = array<i64: 1, 256>}, {transform_indices = @transform_3, window_bounds = array<i64: 8, 128>}]} {
    %c0 = arith.constant 0 : index
    %c0_0 = arith.constant 0 : index
    %0 = vector.load %arg2[%c0, %c0_0] : memref<8x128xbf16, #tpu.memory_space<vmem>>, vector<8x128xbf16>
    %c0_1 = arith.constant 0 : index
    %c0_2 = arith.constant 0 : index
    %1 = vector.load %arg3[%c0_1, %c0_2] : memref<128x256xbf16, #tpu.memory_space<vmem>>, vector<128x256xbf16>
    %cst = arith.constant dense<0.000000e+00> : vector<8x256xf32>
    %2 = tpu.matmul %0, %1, %cst {dimension_numbers = #tpu.dot_dimension_numbers<[1], [0], [0], [1], [0, 0, 1, 1], [], []>} : vector<8x128xbf16>, vector<128x256xbf16>, vector<8x256xf32> -> vector<8x256xf32>
    %c0_3 = arith.constant 0 : index
    %c0_4 = arith.constant 0 : index
    %3 = vector.load %arg4[%c0_3, %c0_4] : memref<1x256xf32, #tpu.memory_space<vmem>>, vector<1x256xf32>
    %4 = vector.broadcast %3 : vector<1x256xf32> to vector<8x256xf32>
    %5 = arith.addf %2, %4 : vector<8x256xf32>
    %6 = vector.extract_strided_slice %5 {offsets = [0, 0], sizes = [8, 128], strides = [1, 1]} : vector<8x256xf32> to vector<8x128xf32>
    %7 = vector.extract_strided_slice %5 {offsets = [0, 128], sizes = [8, 128], strides = [1, 1]} : vector<8x256xf32> to vector<8x128xf32>
    %8 = arith.maximumf %6, %7 : vector<8x128xf32>
    %c0_5 = arith.constant 0 : index
    %c0_6 = arith.constant 0 : index
    %9 = vector.load %arg5[%c0_5, %c0_6] : memref<8x128xf32, #tpu.memory_space<vmem>>, vector<8x128xf32>
    tpu.vector_store %arg5[%c0_5, %c0_6], %8 {strides = array<i32>} : memref<8x128xf32, #tpu.memory_space<vmem>>, vector<8x128xf32>,
    return
  }
  func.func @transform_0(%arg0: i32, %arg1: i32) -> (i32, i32) {
    %c0_i32 = arith.constant 0 : i32
    %c0_i32_0 = arith.constant 0 : i32
    return %arg0, %c0_i32 : i32, i32
  }
  func.func @transform_1(%arg0: i32, %arg1: i32) -> (i32, i32) {
    %c0_i32 = arith.constant 0 : i32
    %c0_i32_0 = arith.constant 0 : i32
    return %c0_i32, %arg1 : i32, i32
  }
  func.func @transform_2(%arg0: i32, %arg1: i32) -> (i32, i32) {
    %c0_i32 = arith.constant 0 : i32
    %c0_i32_0 = arith.constant 0 : i32
    return %c0_i32, %arg1 : i32, i32
  }
  func.func @transform_3(%arg0: i32, %arg1: i32) -> (i32, i32) {
    %c0_i32 = arith.constant 0 : i32
    return %arg0, %arg1 : i32, i32
  }
}

</mosaic_0001>

<llo_original>
// kernel: tpu_custom_call.1
$region0: #{tpu_custom_call.1}
  #allocation0 [shape = 'u32[]', space=smem, size = 0x4, offset = 0x4, fixed_abs, tag = 'smem constant byte address 0x4 - core index']
  #allocation1 [shape = 'u32[144,128]{1,0:T(1,128)}', space=vmem, size = 0x12000, scoped, tag = 'internal scratch']
  %s0 = inlined_call_operand.hbm [shape: bf16[8,128], index: 0, kind: input, shape index: {}]
  %s1 = inlined_call_operand.hbm [shape: bf16[128,256], index: 1, kind: input, shape index: {}]
  %s2 = inlined_call_operand.vmem [shape: f32[1,256], index: 2, kind: input, shape index: {}]
  %s3 = inlined_call_operand.hbm [shape: f32[8,128], index: 3, kind: output, shape index: {}]
  %s4 = sld [smem:[#allocation0]]
  $region30: #{tpu_custom_call.1} parent=0
    _
  %s6 = ssub.s32 1, %s4
  %s7 = scalar_select 0, %s6, %s4
  $region1: #{tpu_custom_call.1} parent=0
    #allocation2 [shape = 'u8[2048]{0}', space=vmem, size = 0x800, scoped, tag = 'input window, operand 0, single buffered']
    #allocation3 [shape = 's32[1]{0}', space=sflag, size = 0x4, scoped, tag = 'scoped memory for tpu_custom_call.1']
    #allocation4 [shape = 's32[1]{0}', space=sflag, size = 0x4, scoped, tag = 'scoped memory for tpu_custom_call.1']
    #allocation5 [shape = 'u8[65536]{0}', space=vmem, size = 0x10000, scoped, tag = 'input window, operand 1, single buffered']
    #allocation6 [shape = 's32[1]{0}', space=sflag, size = 0x4, scoped, tag = 'scoped memory for tpu_custom_call.1']
    #allocation7 [shape = 'u8[4096]{0}', space=vmem, size = 0x1000, scoped, tag = 'output window, operand 0, single buffered']
    %8 = vsyncpa [#allocation3], 0
    %9 = vsyncpa [#allocation6], 0
    %10 = vsyncpa [#allocation4], 0
    // Predicated region
    $region2: #{tpu_custom_call.1} parent=1 // pred_check
      _
    $region3: #{tpu_custom_call.1} parent=1 // pred_check_branch
      %12 = sbr.rel (0) target = $region5
    $region4: #{tpu_custom_call.1} parent=1 // pred_region
      %s14 = ssub.s32 64, 64
      %15 = vsyncadd [#allocation3], %s14
      %s17 = sshll.u32 [#allocation2], 4
      %s18 = int_to_ptr.vmem [resolvable:$true] %s17
      %20 = dma.hbm_to_vmem [thread:$0]  %s0, 64, %s18, [#allocation3]
    $region5: #{tpu_custom_call.1} parent=1 // pred_fallthru
      _
    // Predicated region
    $region6: #{tpu_custom_call.1} parent=1 // pred_check
      _
    $region7: #{tpu_custom_call.1} parent=1 // pred_check_branch
      %22 = sbr.rel (0) target = $region9
    $region8: #{tpu_custom_call.1} parent=1 // pred_region
      %s24 = ssub.s32 2048, 2048
      %25 = vsyncadd [#allocation6], %s24
      %s26 = sshll.u32 [#allocation5], 4
      %s27 = int_to_ptr.vmem [resolvable:$true] %s26
      %32 = dma.hbm_to_vmem [thread:$0]  %s1, 2048, %s27, [#allocation6], 128, 128, 8
    $region9: #{tpu_custom_call.1} parent=1 // pred_fallthru
      _
    // Predicated region
    $region10: #{tpu_custom_call.1} parent=1 // pred_check
      _
    $region11: #{tpu_custom_call.1} parent=1 // pred_check_branch
      %34 = sbr.rel (0) target = $region13
    $region12: #{tpu_custom_call.1} parent=1 // pred_region
      _
    $region13: #{tpu_custom_call.1} parent=1 // pred_fallthru
      _
    // Predicated region
    $region14: #{tpu_custom_call.1} parent=1 // pred_check
      _
    $region15: #{tpu_custom_call.1} parent=1 // pred_check_branch
      %36 = sbr.rel (0) target = $region17
    $region16: #{tpu_custom_call.1} parent=1 // pred_region
      %37 = dma.done [#allocation3], 64
    $region17: #{tpu_custom_call.1} parent=1 // pred_fallthru
      _
    // Predicated region
    $region18: #{tpu_custom_call.1} parent=1 // pred_check
      _
    $region19: #{tpu_custom_call.1} parent=1 // pred_check_branch
      %39 = sbr.rel (0) target = $region21
    $region20: #{tpu_custom_call.1} parent=1 // pred_region
      %40 = dma.done [#allocation6], 2048
    $region21: #{tpu_custom_call.1} parent=1 // pred_fallthru
      _
    %v42 = vld [vmem:[#allocation2] sm:$0xf]
    %v43 = vld [vmem:[#allocation5] sm:$0xff]
    %v44 = vld [vmem:[#allocation5 + $0x8] sm:$0xff]
    %v45 = vld [vmem:[#allocation5 + $0x10] sm:$0xff]
    %v46 = vld [vmem:[#allocation5 + $0x18] sm:$0xff]
    %v47 = vld [vmem:[#allocation5 + $0x20] sm:$0xff]
    %v48 = vld [vmem:[#allocation5 + $0x28] sm:$0xff]
    %v49 = vld [vmem:[#allocation5 + $0x30] sm:$0xff]
    %v50 = vld [vmem:[#allocation5 + $0x38] sm:$0xff]
    %v51 = vld [vmem:[#allocation5 + $0x40] sm:$0xff]
    %v52 = vld [vmem:[#allocation5 + $0x48] sm:$0xff]
    %v53 = vld [vmem:[#allocation5 + $0x50] sm:$0xff]
    %v54 = vld [vmem:[#allocation5 + $0x58] sm:$0xff]
    %v55 = vld [vmem:[#allocation5 + $0x60] sm:$0xff]
    %v56 = vld [vmem:[#allocation5 + $0x68] sm:$0xff]
    %v57 = vld [vmem:[#allocation5 + $0x70] sm:$0xff]
    %v58 = vld [vmem:[#allocation5 + $0x78] sm:$0xff]
    %v59 = vld [vmem:[%s2] sm:$0x3]
    %v61 = vlaneseq
    %v62 = vshrl.u32 %v61, 7
    %v63 = vsub.s32 0, %v62
    %v64 = vrot.slane %v59, %v63
    %v65 = vlaneseq
    %v66 = vshrl.u32 %v65, 7
    %v67 = vsub.s32 1, %v66
    %v68 = vrot.slane %v59, %v67
    %v87 = vunpack.c.l.b16 %v43
    %v88 = vunpack.c.h.b16 %v43
    %v89 = vunpack.c.l.b16 %v44
    %v90 = vunpack.c.h.b16 %v44
    %v91 = vunpack.c.l.b16 %v45
    %v92 = vunpack.c.h.b16 %v45
    %v93 = vunpack.c.l.b16 %v46
    %v94 = vunpack.c.h.b16 %v46
    %v95 = vunpack.c.l.b16 %v47
    %v96 = vunpack.c.h.b16 %v47
    %v97 = vunpack.c.l.b16 %v48
    %v98 = vunpack.c.h.b16 %v48
    %v99 = vunpack.c.l.b16 %v49
    %v100 = vunpack.c.h.b16 %v49
    %v101 = vunpack.c.l.b16 %v50
    %v102 = vunpack.c.h.b16 %v50
    %v103 = vunpack.c.l.b16 %v51
    %v104 = vunpack.c.h.b16 %v51
    %v105 = vunpack.c.l.b16 %v52
    %v106 = vunpack.c.h.b16 %v52
    %v107 = vunpack.c.l.b16 %v53
    %v108 = vunpack.c.h.b16 %v53
    %v109 = vunpack.c.l.b16 %v54
    %v110 = vunpack.c.h.b16 %v54
    %v111 = vunpack.c.l.b16 %v55
    %v112 = vunpack.c.h.b16 %v55
    %v113 = vunpack.c.l.b16 %v56
    %v114 = vunpack.c.h.b16 %v56
    %v115 = vunpack.c.l.b16 %v57
    %v116 = vunpack.c.h.b16 %v57
    %v117 = vunpack.c.l.b16 %v58
    %v118 = vunpack.c.h.b16 %v58
    %v119 = vpack.c.b16 %v89, %v87
    %v120 = vpack.c.b16 %v90, %v88
    %v121 = vpack.c.b16 %v93, %v91
    %v122 = vpack.c.b16 %v94, %v92
    %v123 = vpack.c.b16 %v97, %v95
    %v124 = vpack.c.b16 %v98, %v96
    %v125 = vpack.c.b16 %v101, %v99
    %v126 = vpack.c.b16 %v102, %v100
    %v127 = vpack.c.b16 %v105, %v103
    %v128 = vpack.c.b16 %v106, %v104
    %v129 = vpack.c.b16 %v109, %v107
    %v130 = vpack.c.b16 %v110, %v108
    %v131 = vpack.c.b16 %v113, %v111
    %v132 = vpack.c.b16 %v114, %v112
    %v133 = vpack.c.b16 %v117, %v115
    %v134 = vpack.c.b16 %v118, %v116
    %151 = vmatprep.subr.bf16.mxu0 %v120
    %152 = vmatpush1.bf16.msra.mxu0 %v119
    %153 = vmatprep.subr.bf16.mxu0 %v122
    %154 = vmatpush1.bf16.msra.mxu0 %v121
    %155 = vmatprep.subr.bf16.mxu0 %v124
    %156 = vmatpush1.bf16.msra.mxu0 %v123
    %157 = vmatprep.subr.bf16.mxu0 %v126
    %158 = vmatpush1.bf16.msra.mxu0 %v125
    %159 = vmatprep.subr.bf16.mxu0 %v128
    %160 = vmatpush1.bf16.msra.mxu0 %v127
    %161 = vmatprep.subr.bf16.mxu0 %v130
    %162 = vmatpush1.bf16.msra.mxu0 %v129
    %163 = vmatprep.subr.bf16.mxu0 %v132
    %164 = vmatpush1.bf16.msra.mxu0 %v131
    %165 = vmatprep.subr.bf16.mxu0 %v134
    %166 = vmatpush1.bf16.msra.mxu0 %v133
    %167 = vmatprep.subr.bf16.mxu0 0
    %168 = vmatpush1.bf16.msra.mxu0 0
    %169 = vmatprep.subr.bf16.mxu0 0
    %170 = vmatpush1.bf16.msra.mxu0 0
    %171 = vmatprep.subr.bf16.mxu0 0
    %172 = vmatpush1.bf16.msra.mxu0 0
    %173 = vmatprep.subr.bf16.mxu0 0
    %174 = vmatpush1.bf16.msra.mxu0 0
    %175 = vmatprep.subr.bf16.mxu0 0
    %176 = vmatpush1.bf16.msra.mxu0 0
    %177 = vmatprep.subr.bf16.mxu0 0
    %178 = vmatpush1.bf16.msra.mxu0 0
    %179 = vmatprep.subr.bf16.mxu0 0
    %180 = vmatpush1.bf16.msra.mxu0 0
    %181 = vmatprep.subr.bf16.mxu0 0
    %182 = vmatpush1.bf16.msra.mxu0 0
    %183 = vmatprep.mubr.bf16.mxu0 0
    %184 = vmatmul.mubr.bf16.gmra.mrb[0].mxu0 %v42
    %v185 = vpop.f32.mrb[0].mxu0
    %v186 = vadd.f32 %v64, %v185
    %v187 = vpop.f32.mrb[0].mxu0
    %v188 = vadd.f32 %v68, %v187
    %v189 = vpop.f32.mrb[0].mxu0
    %v190 = vpop.f32.mrb[0].mxu0
    %191 = vdwg.mxu0
    %v192 = vmax.f32 %v186, %v188
    %193 = vst [vmem:[#allocation7] sm:$0xff] %v192
    // Predicated region
    $region22: #{tpu_custom_call.1} parent=1 // pred_check
      _
    $region23: #{tpu_custom_call.1} parent=1 // pred_check_branch
      %195 = sbr.rel (0) target = $region25
    $region24: #{tpu_custom_call.1} parent=1 // pred_region
      %s197 = ssub.s32 128, 128
      %198 = vsyncadd [#allocation4], %s197
      %s200 = sshll.u32 [#allocation7], 4
      %s201 = int_to_ptr.vmem [resolvable:$true] %s200
      %203 = dma.vmem_to_hbm [thread:$0]  %s201, 128, %s3, [#allocation4]
    $region25: #{tpu_custom_call.1} parent=1 // pred_fallthru
      _
    // Predicated region
    $region26: #{tpu_custom_call.1} parent=1 // pred_check
      _
    $region27: #{tpu_custom_call.1} parent=1 // pred_check_branch
      %205 = sbr.rel (0) target = $region29
    $region28: #{tpu_custom_call.1} parent=1 // pred_region
      %206 = dma.done [#allocation4], 128
    $region29: #{tpu_custom_call.1} parent=1 // pred_fallthru
      _
    %207 = vsyncpa [#allocation3], 1
    %208 = vsyncpa [#allocation6], 1
    %209 = vsyncpa [#allocation4], 1

</llo_original>
